<compile_context>
chip_gen: v6e
topology: v6e:2x2x1
jax: 0.10.0
libtpu: 0.0.40
codegen_flags: <defaults>
</compile_context>

<pallas_src>
import jax
import jax.numpy as jnp
from jax.experimental import pallas as pl
from jax.experimental.pallas import tpu as pltpu


def _avg_pooling_kernel(x_ref, w1_ref, b1_ref, w2_ref, b2_ref,
                        norm_ref, logits_ref, relu_ref):
    j = pl.program_id(1)

    # Embedding + L2-normalize: compute once per batch tile (first class tile).
    @pl.when(j == 0)
    def _():
        net = jnp.dot(x_ref[...], w1_ref[...],
                      preferred_element_type=jnp.float32) + b1_ref[...]
        sumsq = jnp.sum(net * net, axis=1, keepdims=True)
        # F.normalize: net / max(||net||, 1e-12) == net * rsqrt(max(sumsq, 1e-24))
        inv = jax.lax.rsqrt(jnp.maximum(sumsq, 1e-24))
        norm_ref[...] = (net * inv).astype(norm_ref.dtype)
        relu_ref[...] = jnp.maximum(net, 0.0).astype(relu_ref.dtype)

    # Classifier tile: relu(net) @ W2[:, j-block] + b2[j-block]
    logits_ref[...] = (jnp.dot(relu_ref[...], w2_ref[...],
                               preferred_element_type=jnp.float32)
                       + b2_ref[...]).astype(logits_ref.dtype)


def _round_up(v, m):
    return (v + m - 1) // m * m


def avg_pooling_forward(x, w1, b1, w2, b2, *, tm=256, tn=512):
    """AvgPooling.forward.

    x : (N, F) f32 activations.
    w1: (F, E) embeding weight (pre-transposed), b1: (1, E).
    w2: (E, C) classifier weight (pre-transposed), b2: (1, C).
    tm: batch tile (MXU height), tn: class tile (multiple of 128).
    Returns (net_norm (N, E) f32, logits (N, C) f32).
    """
    N, F = x.shape
    E = w1.shape[1]
    C = w2.shape[1]

    TM = min(tm, _round_up(N, 8))            # full-height MXU tiles when N allows
    TN = min(tn, _round_up(C, 128))          # lane-dense classifier tiles
    N_pad = _round_up(N, TM)
    F_pad = _round_up(F, 128)
    E_pad = _round_up(E, 128)
    C_pad = _round_up(_round_up(C, 128), TN)

    f32, bf16 = jnp.float32, jnp.bfloat16
    # Zero-pad + cast matmul operands to bf16 (halves HBM/VMEM bytes; f32 acc).
    xp = jnp.zeros((N_pad, F_pad), bf16).at[:N, :F].set(x.astype(bf16))
    w1p = jnp.zeros((F_pad, E_pad), bf16).at[:F, :E].set(w1.astype(bf16))
    b1p = jnp.zeros((1, E_pad), f32).at[:, :E].set(b1.astype(f32))
    w2p = jnp.zeros((E_pad, C_pad), bf16).at[:E, :C].set(w2.astype(bf16))
    b2p = jnp.zeros((1, C_pad), f32).at[:, :C].set(b2.astype(f32))

    grid = (N_pad // TM, C_pad // TN)

    cost = pl.CostEstimate(
        flops=2 * N_pad * F_pad * E_pad + 2 * N_pad * E_pad * C_pad,
        transcendentals=N_pad,
        bytes_accessed=(xp.size * 2 + w1p.size * 2 + w2p.size * 2
                        + b1p.size * 4 + b2p.size * 4
                        + N_pad * E_pad * 4 + N_pad * C_pad * 4),
    )

    norm_p, logits_p = pl.pallas_call(
        _avg_pooling_kernel,
        out_shape=(
            jax.ShapeDtypeStruct((N_pad, E_pad), f32),   # net_norm
            jax.ShapeDtypeStruct((N_pad, C_pad), f32),   # logits
        ),
        grid=grid,
        in_specs=[
            pl.BlockSpec((TM, F_pad), lambda i, j: (i, 0)),     # x batch tile
            pl.BlockSpec((F_pad, E_pad), lambda i, j: (0, 0)),  # w1 resident
            pl.BlockSpec((1, E_pad), lambda i, j: (0, 0)),      # b1 resident
            pl.BlockSpec((E_pad, TN), lambda i, j: (0, j)),     # w2 class tile
            pl.BlockSpec((1, TN), lambda i, j: (0, j)),         # b2 class tile
        ],
        out_specs=(
            pl.BlockSpec((TM, E_pad), lambda i, j: (i, 0)),     # net_norm (revisited over j)
            pl.BlockSpec((TM, TN), lambda i, j: (i, j)),        # logits
        ),
        scratch_shapes=[pltpu.VMEM((TM, E_pad), bf16)],         # cached relu(net)
        compiler_params=pltpu.CompilerParams(
            dimension_semantics=("parallel", "arbitrary"),
            vmem_limit_bytes=48 * 1024 * 1024,
        ),
        cost_estimate=cost,
    )(xp, w1p, b1p, w2p, b2p)

    # Slice off the padding added for lane/sublane alignment.
    return norm_p[:N, :E], logits_p[:N, :C]


def init_params(key, input_feature_size, embeding_fea_size, num_classes):
    k1, k2 = jax.random.split(key)
    # embeding.weight: kaiming_normal_(mode='fan_out') -> std = sqrt(2/fan_out),
    # fan_out = embeding_fea_size for nn.Linear. Stored transposed (F, E).
    std1 = (2.0 / embeding_fea_size) ** 0.5
    w1 = std1 * jax.random.normal(k1, (input_feature_size, embeding_fea_size),
                                  jnp.float32)
    b1 = jnp.zeros((1, embeding_fea_size), jnp.float32)
    # classifier.weight: normal_(std=0.001). Stored transposed (E, C).
    w2 = 0.001 * jax.random.normal(k2, (embeding_fea_size, num_classes),
                                   jnp.float32)
    b2 = jnp.zeros((1, num_classes), jnp.float32)
    return w1, b1, w2, b2


if __name__ == "__main__":
    # Small demo shapes (deliberately non-multiples of 8/128 to exercise padding,
    # and small tiles so both grid axes have 2 blocks each).
    N = 24       # batch
    F_IN = 96    # input_feature_size   -> padded to 128
    E = 192      # embeding_fea_size    -> padded to 256 (1024 in the original)
    C = 200      # num_classes          -> padded to 256

    key = jax.random.PRNGKey(0)
    kx, kp = jax.random.split(key)
    x = jax.random.normal(kx, (N, F_IN), jnp.float32)
    w1, b1, w2, b2 = init_params(kp, F_IN, E, C)

    net_norm, logits = avg_pooling_forward(x, w1, b1, w2, b2, tm=16, tn=128)
    jax.block_until_ready((net_norm, logits))

    # Reference in f32 on bf16-rounded matmul operands (matches kernel numerics).
    xr = x.astype(jnp.bfloat16).astype(jnp.float32)
    w1r = w1.astype(jnp.bfloat16).astype(jnp.float32)
    w2r = w2.astype(jnp.bfloat16).astype(jnp.float32)
    net_ref = xr @ w1r + b1
    norm_ref = net_ref / jnp.maximum(
        jnp.sqrt(jnp.sum(net_ref * net_ref, axis=1, keepdims=True)), 1e-12)
    logits_ref = jnp.maximum(net_ref, 0.0) @ w2r + b2

    assert net_norm.shape == (N, E) and logits.shape == (N, C)
    assert jnp.allclose(net_norm, norm_ref, atol=1e-3, rtol=1e-2)
    assert jnp.allclose(logits, logits_ref, atol=1e-3, rtol=1e-2)

    print("KERNEL_OK")
</pallas_src>

<mosaic_0001>
module attributes {stable_mosaic.version = 11 : i64} {
  func.func @_avg_pooling_kernel(%arg0: i32, %arg1: i32, %arg2: memref<16x128xbf16, #tpu.memory_space<vmem>>, %arg3: memref<128x256xbf16, #tpu.memory_space<vmem>>, %arg4: memref<1x256xf32, #tpu.memory_space<vmem>>, %arg5: memref<256x128xbf16, #tpu.memory_space<vmem>>, %arg6: memref<1x128xf32, #tpu.memory_space<vmem>>, %arg7: memref<16x256xf32, #tpu.memory_space<vmem>>, %arg8: memref<16x128xf32, #tpu.memory_space<vmem>>, %arg9: memref<16x256xbf16, #tpu.memory_space<vmem>>) attributes {dimension_semantics = [#tpu.dimension_semantics<parallel>, #tpu.dimension_semantics<arbitrary>], iteration_bounds = array<i64: 2, 2>, scalar_prefetch = 0 : i64, scratch_operands = 1 : i64, tpu.core_type = #tpu.core_type<tc>, window_params = [{transform_indices = @transform_0, window_bounds = array<i64: 16, 128>}, {pipeline_mode = #tpu.pipeline_mode<synchronous>, transform_indices = @transform_1, window_bounds = array<i64: 128, 256>}, {pipeline_mode = #tpu.pipeline_mode<synchronous>, transform_indices = @transform_2, window_bounds = array<i64: 1, 256>}, {transform_indices = @transform_3, window_bounds = array<i64: 256, 128>}, {transform_indices = @transform_4, window_bounds = array<i64: 1, 128>}, {transform_indices = @transform_5, window_bounds = array<i64: 16, 256>}, {transform_indices = @transform_6, window_bounds = array<i64: 16, 128>}]} {
    %c0_i32 = arith.constant 0 : i32
    %0 = arith.cmpi eq, %arg1, %c0_i32 : i32
    %1 = arith.extui %0 : i1 to i32
    %c0_i32_0 = arith.constant 0 : i32
    %2 = arith.cmpi ne, %1, %c0_i32_0 : i32
    scf.if %2 {
      %c0_8 = arith.constant 0 : index
      %c0_9 = arith.constant 0 : index
      %10 = vector.load %arg2[%c0_8, %c0_9] : memref<16x128xbf16, #tpu.memory_space<vmem>>, vector<16x128xbf16>
      %c0_10 = arith.constant 0 : index
      %c0_11 = arith.constant 0 : index
      %11 = vector.load %arg3[%c0_10, %c0_11] : memref<128x256xbf16, #tpu.memory_space<vmem>>, vector<128x256xbf16>
      %cst_12 = arith.constant dense<0.000000e+00> : vector<16x256xf32>
      %12 = tpu.matmul %10, %11, %cst_12 {dimension_numbers = #tpu.dot_dimension_numbers<[1], [0], [0], [1], [0, 0, 1, 1], [], []>} : vector<16x128xbf16>, vector<128x256xbf16>, vector<16x256xf32> -> vector<16x256xf32>
      %c0_13 = arith.constant 0 : index
      %c0_14 = arith.constant 0 : index
      %13 = vector.load %arg4[%c0_13, %c0_14] : memref<1x256xf32, #tpu.memory_space<vmem>>, vector<1x256xf32>
      %14 = vector.broadcast %13 : vector<1x256xf32> to vector<16x256xf32>
      %15 = arith.addf %12, %14 : vector<16x256xf32>
      %16 = arith.mulf %15, %15 : vector<16x256xf32>
      %cst_15 = arith.constant dense<0.000000e+00> : vector<16xf32>
      %17 = vector.multi_reduction <add>, %16, %cst_15 [1] : vector<16x256xf32> to vector<16xf32>
      %18 = vector.shape_cast %17 : vector<16xf32> to vector<16x1xf32>
      %cst_16 = arith.constant 1.000000e-24 : f32
      %19 = vector.broadcast %cst_16 : f32 to vector<16x1xf32>
      %20 = arith.maximumf %18, %19 : vector<16x1xf32>
      %21 = math.rsqrt %20 : vector<16x1xf32>
      %22 = vector.broadcast %21 : vector<16x1xf32> to vector<16x256xf32>
      %23 = arith.mulf %15, %22 : vector<16x256xf32>
      %c0_17 = arith.constant 0 : index
      %c0_18 = arith.constant 0 : index
      %24 = vector.load %arg7[%c0_17, %c0_18] : memref<16x256xf32, #tpu.memory_space<vmem>>, vector<16x256xf32>
      tpu.vector_store %arg7[%c0_17, %c0_18], %23 {strides = array<i32>} : memref<16x256xf32, #tpu.memory_space<vmem>>, vector<16x256xf32>,
      %cst_19 = arith.constant 0.000000e+00 : f32
      %25 = vector.broadcast %cst_19 : f32 to vector<16x256xf32>
      %26 = arith.maximumf %15, %25 : vector<16x256xf32>
      %27 = arith.truncf %26 : vector<16x256xf32> to vector<16x256xbf16>
      %c0_20 = arith.constant 0 : index
      %c0_21 = arith.constant 0 : index
      %28 = vector.load %arg9[%c0_20, %c0_21] : memref<16x256xbf16, #tpu.memory_space<vmem>>, vector<16x256xbf16>
      tpu.vector_store %arg9[%c0_20, %c0_21], %27 {strides = array<i32>} : memref<16x256xbf16, #tpu.memory_space<vmem>>, vector<16x256xbf16>,
    } else {
    }
    %c0 = arith.constant 0 : index
    %c0_1 = arith.constant 0 : index
    %3 = vector.load %arg9[%c0, %c0_1] : memref<16x256xbf16, #tpu.memory_space<vmem>>, vector<16x256xbf16>
    %c0_2 = arith.constant 0 : index
    %c0_3 = arith.constant 0 : index
    %4 = vector.load %arg5[%c0_2, %c0_3] : memref<256x128xbf16, #tpu.memory_space<vmem>>, vector<256x128xbf16>
    %cst = arith.constant dense<0.000000e+00> : vector<16x128xf32>
    %5 = tpu.matmul %3, %4, %cst {dimension_numbers = #tpu.dot_dimension_numbers<[1], [0], [0], [1], [0, 0, 1, 1], [], []>} : vector<16x256xbf16>, vector<256x128xbf16>, vector<16x128xf32> -> vector<16x128xf32>
    %c0_4 = arith.constant 0 : index
    %c0_5 = arith.constant 0 : index
    %6 = vector.load %arg6[%c0_4, %c0_5] : memref<1x128xf32, #tpu.memory_space<vmem>>, vector<1x128xf32>
    %7 = vector.broadcast %6 : vector<1x128xf32> to vector<16x128xf32>
    %8 = arith.addf %5, %7 : vector<16x128xf32>
    %c0_6 = arith.constant 0 : index
    %c0_7 = arith.constant 0 : index
    %9 = vector.load %arg8[%c0_6, %c0_7] : memref<16x128xf32, #tpu.memory_space<vmem>>, vector<16x128xf32>
    tpu.vector_store %arg8[%c0_6, %c0_7], %8 {strides = array<i32>} : memref<16x128xf32, #tpu.memory_space<vmem>>, vector<16x128xf32>,
    return
  }
  func.func @transform_0(%arg0: i32, %arg1: i32) -> (i32, i32) {
    %c0_i32 = arith.constant 0 : i32
    %c0_i32_0 = arith.constant 0 : i32
    return %arg0, %c0_i32 : i32, i32
  }
  func.func @transform_1(%arg0: i32, %arg1: i32) -> (i32, i32) {
    %c0_i32 = arith.constant 0 : i32
    %c0_i32_0 = arith.constant 0 : i32
    %c0_i32_1 = arith.constant 0 : i32
    return %c0_i32, %c0_i32_0 : i32, i32
  }
  func.func @transform_2(%arg0: i32, %arg1: i32) -> (i32, i32) {
    %c0_i32 = arith.constant 0 : i32
    %c0_i32_0 = arith.constant 0 : i32
    %c0_i32_1 = arith.constant 0 : i32
    return %c0_i32, %c0_i32_0 : i32, i32
  }
  func.func @transform_3(%arg0: i32, %arg1: i32) -> (i32, i32) {
    %c0_i32 = arith.constant 0 : i32
    %c0_i32_0 = arith.constant 0 : i32
    return %c0_i32, %arg1 : i32, i32
  }
  func.func @transform_4(%arg0: i32, %arg1: i32) -> (i32, i32) {
    %c0_i32 = arith.constant 0 : i32
    %c0_i32_0 = arith.constant 0 : i32
    return %c0_i32, %arg1 : i32, i32
  }
  func.func @transform_5(%arg0: i32, %arg1: i32) -> (i32, i32) {
    %c0_i32 = arith.constant 0 : i32
    %c0_i32_0 = arith.constant 0 : i32
    return %arg0, %c0_i32 : i32, i32
  }
  func.func @transform_6(%arg0: i32, %arg1: i32) -> (i32, i32) {
    %c0_i32 = arith.constant 0 : i32
    return %arg0, %arg1 : i32, i32
  }
}

</mosaic_0001>

<llo_original>
// kernel: tpu_custom_call.1
$region0: #{tpu_custom_call.1}
  #allocation0 [shape = 'u32[]', space=smem, size = 0x4, offset = 0x4, fixed_abs, tag = 'smem constant byte address 0x4 - core index']
  #allocation1 [shape = 'u32[144,128]{1,0:T(1,128)}', space=vmem, size = 0x12000, scoped, tag = 'internal scratch']
  #allocation2 [shape = 'bf16[16,256]{1,0:T(8,128)(2,1)}', space=vmem, size = 0x2000, scoped, tag = 'scratch operand']
  %s0 = inlined_call_operand.hbm [shape: bf16[32,128], index: 0, kind: input, shape index: {}]
  %s1 = inlined_call_operand.hbm [shape: bf16[128,256], index: 1, kind: input, shape index: {}]
  %s2 = inlined_call_operand.vmem [shape: f32[1,256], index: 2, kind: input, shape index: {}]
  %s3 = inlined_call_operand.hbm [shape: bf16[256,256], index: 3, kind: input, shape index: {}]
  %s4 = inlined_call_operand.vmem [shape: f32[1,256], index: 4, kind: input, shape index: {}]
  %s5 = inlined_call_operand.hbm [shape: f32[32,256], index: 5, kind: output, shape index: {0}]
  %s6 = inlined_call_operand.hbm [shape: f32[32,256], index: 6, kind: output, shape index: {1}]
  %7 = xla_tuple %s5, %s6
  %s8 = sld [smem:[#allocation0]]
  $region77: #{tpu_custom_call.1} parent=0
    _
  %s10 = ssub.s32 1, %s8
  %s11 = scalar_select 0, %s10, %s8
  $region1: #{tpu_custom_call.1} parent=0
    #allocation3 [shape = 'u8[8192]{0}', space=vmem, size = 0x2000, scoped, tag = 'input window, operand 0']
    #allocation4 [shape = 's32[2]{0}', space=sflag, size = 0x8, scoped, tag = 'scoped memory for tpu_custom_call.1']
    #allocation5 [shape = 's32[2]{0}', space=sflag, size = 0x8, scoped, tag = 'scoped memory for tpu_custom_call.1']
    #allocation6 [shape = 'u8[65536]{0}', space=vmem, size = 0x10000, scoped, tag = 'input window, operand 1, single buffered']
    #allocation7 [shape = 's32[1]{0}', space=sflag, size = 0x4, scoped, tag = 'scoped memory for tpu_custom_call.1']
    #allocation8 [shape = 'u8[131072]{0}', space=vmem, size = 0x20000, scoped, tag = 'input window, operand 3']
    #allocation9 [shape = 'u8[32768]{0}', space=vmem, size = 0x8000, scoped, tag = 'output window, operand 0']
    #allocation10 [shape = 'u8[16384]{0}', space=vmem, size = 0x4000, scoped, tag = 'output window, operand 1']
    #allocation11 [shape = 's32[2]{0}', space=sflag, size = 0x8, scoped, tag = 'scoped memory for tpu_custom_call.1']
    %12 = vsyncpa [#allocation4], 0
    %s13 = scalar_lea.sflag [#allocation4], 1
    %14 = vsyncpa %s13, 0
    %15 = vsyncpa [#allocation7], 0
    %16 = vsyncpa [#allocation5], 0
    %s17 = scalar_lea.sflag [#allocation5], 1
    %18 = vsyncpa %s17, 0
    %19 = vsyncpa [#allocation11], 0
    %s20 = scalar_lea.sflag [#allocation11], 1
    %21 = vsyncpa %s20, 0
    loop: start=0, step=1, limit=6
    $region2: #{tpu_custom_call.1} parent=1 // loop_pre_header
      _
    $region3: #{tpu_custom_call.1} parent=1 // loop_header
      %s23 = sphi 0, %s27
      %p24 = scmp.ge.s32.totalorder %s23, 6
      %s30 = sphi 0, %s42
      %s31 = sphi 0, %s38
      %s32 = sphi 0, %s30
      %s33 = sphi 0, %s31
      %s34 = sphi 0, %s32
      %s35 = sphi 0, %s33
      %s45 = sphi 0, %s47
      %s48 = sphi 0, %s45
      %s49 = sphi 0, %s48
      %s65 = sphi 0, %s49
      %s69 = sphi 0, %s69
      %s71 = sphi 0, %s69
      %s72 = sphi 0, %s71
      %s86 = sphi 0, %s72
      %s90 = sphi 0, %s90
      %s92 = sphi 0, %s90
      %s93 = sphi 0, %s92
      %s107 = sphi 0, %s93
      %s113 = sphi 0, %s115
      %s116 = sphi 0, %s113
      %s117 = sphi 0, %s116
      %s133 = sphi 0, %s117
      %s139 = sphi 0, %s141
      %s142 = sphi 0, %s139
      %s143 = sphi 0, %s142
      %s159 = sphi 0, %s143
      %s165 = sphi 0, %s167
      %s168 = sphi 0, %s165
      %s169 = sphi 0, %s168
      %s185 = sphi 0, %s169
      %s193 = sphi 0, %s195
      %s196 = sphi 0, %s193
      %s197 = sphi 0, %s196
      %s213 = sphi 0, %s197
    $region4: #{tpu_custom_call.1} parent=1 // loop_header_branch
      %26 = sbr.rel (%p24) target = $region8
    $region5: #{tpu_custom_call.1} parent=1 // loop_body
      %s28 = ssub.s32 %s23, 1
      %s29 = ssub.s32 %s23, 2
      %s36 = sadd.s32 1, %s31
      %p37 = scmp.ge.s32.totalorder %s36, 2
      %s38 = scalar_select %p37, 0, %s36
      %s39 = sadd.s32 1, %s30
      %s40 = scalar_select %p37, %s39, %s30
      %p41 = scmp.ge.s32.totalorder %s40, 2
      %s42 = scalar_select %p41, 0, %s40
      %s43 = ssub.s32 %s30, %s42
      %p44 = scmp.eq.s32.totalorder %s43, 0
      %s46 = sadd.s32 %s45, 1
      %s47 = scalar_select %p44, %s45, %s46
      %p50 = pneg %p44
      %p51 = scmp.eq.s32.totalorder %s23, 3
      %p52 = por %p50, %p51
      %p53 = scmp.ne.s32.totalorder %s45, %s48
      %p54 = scmp.eq.s32.totalorder %s23, 0
      %p55 = por %p53, %p54
      %p56 = scmp.ne.s32.totalorder %s45, %s48
      %p57 = scmp.eq.s32.totalorder %s28, 3
      %p58 = por %p56, %p57
      %p59 = scmp.ne.s32.totalorder %s48, %s49
      %p60 = scmp.eq.s32.totalorder %s28, 0
      %p61 = por %p59, %p60
      %p62 = scmp.ne.s32.totalorder %s48, %s49
      %p63 = scmp.eq.s32.totalorder %s29, 3
      %p64 = por %p62, %p63
      %p66 = scmp.ne.s32.totalorder %s49, %s65
      %p67 = scmp.eq.s32.totalorder %s29, 0
      %p68 = por %p66, %p67
      %s70 = sadd.s32 %s69, 1
      %p73 = scmp.eq.s32.totalorder %s23, 3
      %p74 = scmp.ne.s32.totalorder %s69, %s71
      %p75 = scmp.eq.s32.totalorder %s23, 0
      %p76 = por %p74, %p75
      %p77 = scmp.ne.s32.totalorder %s69, %s71
      %p78 = scmp.eq.s32.totalorder %s28, 3
      %p79 = por %p77, %p78
      %p80 = scmp.ne.s32.totalorder %s71, %s72
      %p81 = scmp.eq.s32.totalorder %s28, 0
      %p82 = por %p80, %p81
      %p83 = scmp.ne.s32.totalorder %s71, %s72
      %p84 = scmp.eq.s32.totalorder %s29, 3
      %p85 = por %p83, %p84
      %p87 = scmp.ne.s32.totalorder %s72, %s86
      %p88 = scmp.eq.s32.totalorder %s29, 0
      %p89 = por %p87, %p88
      %s91 = sadd.s32 %s90, 1
      %p94 = scmp.eq.s32.totalorder %s23, 3
      %p95 = scmp.ne.s32.totalorder %s90, %s92
      %p96 = scmp.eq.s32.totalorder %s23, 0
      %p97 = por %p95, %p96
      %p98 = scmp.ne.s32.totalorder %s90, %s92
      %p99 = scmp.eq.s32.totalorder %s28, 3
      %p100 = por %p98, %p99
      %p101 = scmp.ne.s32.totalorder %s92, %s93
      %p102 = scmp.eq.s32.totalorder %s28, 0
      %p103 = por %p101, %p102
      %p104 = scmp.ne.s32.totalorder %s92, %s93
      %p105 = scmp.eq.s32.totalorder %s29, 3
      %p106 = por %p104, %p105
      %p108 = scmp.ne.s32.totalorder %s93, %s107
      %p109 = scmp.eq.s32.totalorder %s29, 0
      %p110 = por %p108, %p109
      %s111 = ssub.s32 %s31, %s38
      %p112 = scmp.eq.s32.totalorder %s111, 0
      %s114 = sadd.s32 %s113, 1
      %s115 = scalar_select %p112, %s113, %s114
      %p118 = pneg %p112
      %p119 = scmp.eq.s32.totalorder %s23, 3
      %p120 = por %p118, %p119
      %p121 = scmp.ne.s32.totalorder %s113, %s116
      %p122 = scmp.eq.s32.totalorder %s23, 0
      %p123 = por %p121, %p122
      %p124 = scmp.ne.s32.totalorder %s113, %s116
      %p125 = scmp.eq.s32.totalorder %s28, 3
      %p126 = por %p124, %p125
      %p127 = scmp.ne.s32.totalorder %s116, %s117
      %p128 = scmp.eq.s32.totalorder %s28, 0
      %p129 = por %p127, %p128
      %p130 = scmp.ne.s32.totalorder %s116, %s117
      %p131 = scmp.eq.s32.totalorder %s29, 3
      %p132 = por %p130, %p131
      %p134 = scmp.ne.s32.totalorder %s117, %s133
      %p135 = scmp.eq.s32.totalorder %s29, 0
      %p136 = por %p134, %p135
      %s137 = ssub.s32 %s31, %s38
      %p138 = scmp.eq.s32.totalorder %s137, 0
      %s140 = sadd.s32 %s139, 1
      %s141 = scalar_select %p138, %s139, %s140
      %p144 = pneg %p138
      %p145 = scmp.eq.s32.totalorder %s23, 3
      %p146 = por %p144, %p145
      %p147 = scmp.ne.s32.totalorder %s139, %s142
      %p148 = scmp.eq.s32.totalorder %s23, 0
      %p149 = por %p147, %p148
      %p150 = scmp.ne.s32.totalorder %s139, %s142
      %p151 = scmp.eq.s32.totalorder %s28, 3
      %p152 = por %p150, %p151
      %p153 = scmp.ne.s32.totalorder %s142, %s143
      %p154 = scmp.eq.s32.totalorder %s28, 0
      %p155 = por %p153, %p154
      %p156 = scmp.ne.s32.totalorder %s142, %s143
      %p157 = scmp.eq.s32.totalorder %s29, 3
      %p158 = por %p156, %p157
      %p160 = scmp.ne.s32.totalorder %s143, %s159
      %p161 = scmp.eq.s32.totalorder %s29, 0
      %p162 = por %p160, %p161
      %s163 = ssub.s32 %s30, %s42
      %p164 = scmp.eq.s32.totalorder %s163, 0
      %s166 = sadd.s32 %s165, 1
      %s167 = scalar_select %p164, %s165, %s166
      %p170 = pneg %p164
      %p171 = scmp.eq.s32.totalorder %s23, 3
      %p172 = por %p170, %p171
      %p173 = scmp.ne.s32.totalorder %s165, %s168
      %p174 = scmp.eq.s32.totalorder %s23, 0
      %p175 = por %p173, %p174
      %p176 = scmp.ne.s32.totalorder %s165, %s168
      %p177 = scmp.eq.s32.totalorder %s28, 3
      %p178 = por %p176, %p177
      %p179 = scmp.ne.s32.totalorder %s168, %s169
      %p180 = scmp.eq.s32.totalorder %s28, 0
      %p181 = por %p179, %p180
      %p182 = scmp.ne.s32.totalorder %s168, %s169
      %p183 = scmp.eq.s32.totalorder %s29, 3
      %p184 = por %p182, %p183
      %p186 = scmp.ne.s32.totalorder %s169, %s185
      %p187 = scmp.eq.s32.totalorder %s29, 0
      %p188 = por %p186, %p187
      %s189 = ssub.s32 %s30, %s42
      %s190 = ssub.s32 %s31, %s38
      %s191 = sor.u32 %s189, %s190
      %p192 = scmp.eq.s32.totalorder %s191, 0
      %s194 = sadd.s32 %s193, 1
      %s195 = scalar_select %p192, %s193, %s194
      %p198 = pneg %p192
      %p199 = scmp.eq.s32.totalorder %s23, 3
      %p200 = por %p198, %p199
      %p201 = scmp.ne.s32.totalorder %s193, %s196
      %p202 = scmp.eq.s32.totalorder %s23, 0
      %p203 = por %p201, %p202
      %p204 = scmp.ne.s32.totalorder %s193, %s196
      %p205 = scmp.eq.s32.totalorder %s28, 3
      %p206 = por %p204, %p205
      %p207 = scmp.ne.s32.totalorder %s196, %s197
      %p208 = scmp.eq.s32.totalorder %s28, 0
      %p209 = por %p207, %p208
      %p210 = scmp.ne.s32.totalorder %s196, %s197
      %p211 = scmp.eq.s32.totalorder %s29, 3
      %p212 = por %p210, %p211
      %p214 = scmp.ne.s32.totalorder %s197, %s213
      %p215 = scmp.eq.s32.totalorder %s29, 0
      %p216 = por %p214, %p215
      %p217 = scmp.le.s32.totalorder 1, %s23
      %p218 = scmp.lt.s32.totalorder %s23, 5
      %p219 = pnand %p217, %p218
      %p220 = pneg %p219
      // Predicated region
      $region9: #{tpu_custom_call.1} parent=5 // pred_check
        _
      $region10: #{tpu_custom_call.1} parent=5 // pred_check_branch
        %222 = sbr.rel (%p219) target = $region12
      $region11: #{tpu_custom_call.1} parent=5 // pred_region
        %s223 = ssub.s32 %s23, 1
        // Predicated region
        $region13: #{tpu_custom_call.1} parent=11 // pred_check
          %p224 = pneg %p82
        $region14: #{tpu_custom_call.1} parent=11 // pred_check_branch
          %226 = sbr.rel (%p224) target = $region16
        $region15: #{tpu_custom_call.1} parent=11 // pred_region
          %s228 = ssub.s32 2048, 2048
          %229 = vsyncadd [#allocation7], %s228
          %s230 = sshll.u32 [#allocation6], 4
          %s231 = int_to_ptr.vmem [resolvable:$true] %s230
          %236 = dma.hbm_to_vmem [thread:$0]  %s1, 2048, %s231, [#allocation7], 128, 128, 8
        $region16: #{tpu_custom_call.1} parent=11 // pred_fallthru
          _
        // Predicated region
        $region17: #{tpu_custom_call.1} parent=11 // pred_check
          %p237 = pneg %p103
        $region18: #{tpu_custom_call.1} parent=11 // pred_check_branch
          %239 = sbr.rel (%p237) target = $region20
        $region19: #{tpu_custom_call.1} parent=11 // pred_region
          _
        $region20: #{tpu_custom_call.1} parent=11 // pred_fallthru
          _
      $region12: #{tpu_custom_call.1} parent=5 // pred_fallthru
        _
      %p240 = scmp.lt.s32.totalorder %s23, 4
      // Predicated region
      $region21: #{tpu_custom_call.1} parent=5 // pred_check
        %p241 = pneg %p240
      $region22: #{tpu_custom_call.1} parent=5 // pred_check_branch
        %243 = sbr.rel (%p241) target = $region24
      $region23: #{tpu_custom_call.1} parent=5 // pred_region
        // Predicated region
        $region25: #{tpu_custom_call.1} parent=23 // pred_check
          %p244 = pneg %p55
        $region26: #{tpu_custom_call.1} parent=23 // pred_check_branch
          %246 = sbr.rel (%p244) target = $region28
        $region27: #{tpu_custom_call.1} parent=23 // pred_region
          %s247 = sand.u32 %s23, 1
          %s248 = scalar_lea.sflag [#allocation4], %s247
          %s249 = sand.u32 %s45, 1
          %s250 = smul.addr %s249, 8
          %s251 = scalar_lea.vmem [#allocation3], %s250
          %s252 = smul.u32 2, %s30
          %s254 = ssub.s32 128, 128
          %255 = vsyncadd %s248, %s254
          %s256 = smul.addr %s252, 64
          %s257 = scalar_lea.hbm %s0, %s256
          %s258 = sshll.u32 %s251, 4
          %s259 = int_to_ptr.vmem [resolvable:$true] %s258
          %264 = dma.hbm_to_vmem [thread:$0]  %s257, 128, %s259, %s248, 64, 64, 4
        $region28: #{tpu_custom_call.1} parent=23 // pred_fallthru
          _
        // Predicated region
        $region29: #{tpu_custom_call.1} parent=23 // pred_check
          %p265 = pneg %p123
        $region30: #{tpu_custom_call.1} parent=23 // pred_check_branch
          %267 = sbr.rel (%p265) target = $region32
        $region31: #{tpu_custom_call.1} parent=23 // pred_region
          %s268 = sand.u32 %s23, 1
          %s269 = scalar_lea.sflag [#allocation4], %s268
          %s270 = sand.u32 %s113, 1
          %s271 = smul.addr %s270, 128
          %s272 = scalar_lea.vmem [#allocation8], %s271
          %s274 = ssub.s32 2048, 2048
          %275 = vsyncadd %s269, %s274
          %s276 = smul.addr %s31, 64
          %s277 = scalar_lea.hbm %s3, %s276
          %s278 = sshll.u32 %s272, 4
          %s279 = int_to_ptr.vmem [resolvable:$true] %s278
          %284 = dma.hbm_to_vmem [thread:$0]  %s277, 2048, %s279, %s269, 128, 64, 4
        $region32: #{tpu_custom_call.1} parent=23 // pred_fallthru
          _
        // Predicated region
        $region33: #{tpu_custom_call.1} parent=23 // pred_check
          %p285 = pneg %p149
        $region34: #{tpu_custom_call.1} parent=23 // pred_check_branch
          %287 = sbr.rel (%p285) target = $region36
        $region35: #{tpu_custom_call.1} parent=23 // pred_region
          %p288 = scmp.lt.s32.totalorder %s31, 1
          %s289 = scalar_select %p288, %s31, 1
          %s290 = scalar_lea.vmem %s4, %s289
        $region36: #{tpu_custom_call.1} parent=23 // pred_fallthru
          _
      $region24: #{tpu_custom_call.1} parent=5 // pred_fallthru
        _
      %p291 = scmp.le.s32.totalorder 1, %s23
      %p292 = scmp.lt.s32.totalorder %s23, 5
      %p293 = pnand %p291, %p292
      %p294 = pneg %p293
      // Predicated region
      $region37: #{tpu_custom_call.1} parent=5 // pred_check
        _
      $region38: #{tpu_custom_call.1} parent=5 // pred_check_branch
        %296 = sbr.rel (%p293) target = $region40
      $region39: #{tpu_custom_call.1} parent=5 // pred_region
        %s297 = ssub.s32 %s23, 1
        %s298 = sand.u32 %s28, 1
        %s299 = scalar_lea.sflag [#allocation4], %s298
        %s300 = sand.u32 %s48, 1
        %s301 = smul.addr %s300, 8
        %s302 = scalar_lea.vmem [#allocation3], %s301
        // Predicated region
        $region41: #{tpu_custom_call.1} parent=39 // pred_check
          %p303 = pneg %p61
        $region42: #{tpu_custom_call.1} parent=39 // pred_check_branch
          %305 = sbr.rel (%p303) target = $region44
        $region43: #{tpu_custom_call.1} parent=39 // pred_region
          %306 = dma.done %s299, 128
        $region44: #{tpu_custom_call.1} parent=39 // pred_fallthru
          _
        // Predicated region
        $region45: #{tpu_custom_call.1} parent=39 // pred_check
          %p307 = pneg %p82
        $region46: #{tpu_custom_call.1} parent=39 // pred_check_branch
          %309 = sbr.rel (%p307) target = $region48
        $region47: #{tpu_custom_call.1} parent=39 // pred_region
          %310 = dma.done [#allocation7], 2048
        $region48: #{tpu_custom_call.1} parent=39 // pred_fallthru
          _
        %s311 = sand.u32 %s28, 1
        %s312 = scalar_lea.sflag [#allocation4], %s311
        %s313 = sand.u32 %s116, 1
        %s314 = smul.addr %s313, 128
        %s315 = scalar_lea.vmem [#allocation8], %s314
        // Predicated region
        $region49: #{tpu_custom_call.1} parent=39 // pred_check
          %p316 = pneg %p129
        $region50: #{tpu_custom_call.1} parent=39 // pred_check_branch
          %318 = sbr.rel (%p316) target = $region52
        $region51: #{tpu_custom_call.1} parent=39 // pred_region
          %319 = dma.done %s312, 2048
        $region52: #{tpu_custom_call.1} parent=39 // pred_fallthru
          _
        %s320 = sand.u32 %s28, 1
        %s321 = scalar_lea.sflag [#allocation4], %s320
        %s322 = sand.u32 %s48, 1
        %s323 = smul.addr %s322, 8
        %s324 = scalar_lea.vmem [#allocation3], %s323
        %p325 = pneg %p61
        %p326 = pneg %p58
        %p327 = pneg %p82
        %p328 = pneg %p79
        %p329 = pneg %p103
        %p330 = pneg %p100
        %s331 = sand.u32 %s28, 1
        %s332 = scalar_lea.sflag [#allocation4], %s331
        %s333 = sand.u32 %s116, 1
        %s334 = smul.addr %s333, 128
        %s335 = scalar_lea.vmem [#allocation8], %s334
        %p336 = pneg %p129
        %p337 = pneg %p126
        %p338 = scmp.lt.s32.totalorder %s33, 1
        %s339 = scalar_select %p338, %s33, 1
        %s340 = scalar_lea.vmem %s4, %s339
        %p341 = pneg %p155
        %p342 = pneg %p152
        %p343 = pneg %p181
        %p344 = pneg %p178
        %s345 = sand.u32 %s168, 1
        %s346 = scalar_lea.sflag [#allocation5], %s345
        %s347 = sand.u32 %s168, 1
        %s348 = smul.addr %s347, 32
        %s349 = scalar_lea.vmem [#allocation9], %s348
        %p350 = pneg %p209
        %p351 = pneg %p206
        %s352 = sand.u32 %s196, 1
        %s353 = scalar_lea.sflag [#allocation11], %s352
        %s354 = sand.u32 %s196, 1
        %s355 = smul.addr %s354, 16
        %s356 = scalar_lea.vmem [#allocation10], %s355
        %s357 = smul.u32 2, %s32
        %p358 = scmp.lt.s32.totalorder %s33, 1
        %s359 = scalar_select %p358, %s33, 1
        %s360 = scalar_lea.vmem %s4, %s359
        %s361 = smul.u32 2, %s32
        %s362 = smul.u32 2, %s32
        %p364 = scmp.eq.s32.totalorder %s33, 0
        // Predicated region
        $region53: #{tpu_custom_call.1} parent=39 // pred_check
          %p365 = pneg %p364
        $region54: #{tpu_custom_call.1} parent=39 // pred_check_branch
          %367 = sbr.rel (%p365) target = $region56
        $region55: #{tpu_custom_call.1} parent=39 // pred_region
          %v368 = vld [vmem:[%s302] sm:$0xf]
          %v369 = vld [vmem:[%s302 + $0x4] sm:$0xf]
          %v370 = vld [vmem:[#allocation6] sm:$0xff]
          %v371 = vld [vmem:[#allocation6 + $0x8] sm:$0xff]
          %v372 = vld [vmem:[#allocation6 + $0x10] sm:$0xff]
          %v373 = vld [vmem:[#allocation6 + $0x18] sm:$0xff]
          %v374 = vld [vmem:[#allocation6 + $0x20] sm:$0xff]
          %v375 = vld [vmem:[#allocation6 + $0x28] sm:$0xff]
          %v376 = vld [vmem:[#allocation6 + $0x30] sm:$0xff]
          %v377 = vld [vmem:[#allocation6 + $0x38] sm:$0xff]
          %v378 = vld [vmem:[#allocation6 + $0x40] sm:$0xff]
          %v379 = vld [vmem:[#allocation6 + $0x48] sm:$0xff]
          %v380 = vld [vmem:[#allocation6 + $0x50] sm:$0xff]
          %v381 = vld [vmem:[#allocation6 + $0x58] sm:$0xff]
          %v382 = vld [vmem:[#allocation6 + $0x60] sm:$0xff]
          %v383 = vld [vmem:[#allocation6 + $0x68] sm:$0xff]
          %v384 = vld [vmem:[#allocation6 + $0x70] sm:$0xff]
          %v385 = vld [vmem:[#allocation6 + $0x78] sm:$0xff]
          %v386 = vld [vmem:[%s2] sm:$0x3]
          %v388 = vlaneseq
          %v389 = vshrl.u32 %v388, 7
          %v390 = vsub.s32 0, %v389
          %v391 = vrot.slane %v386, %v390
          %v392 = vlaneseq
          %v393 = vshrl.u32 %v392, 7
          %v394 = vsub.s32 1, %v393
          %v395 = vrot.slane %v386, %v394
          %v400 = vunpack.c.l.b16 %v368
          %v401 = vunpack.c.l.b16 %v369
          %v402 = vpack.c.b16 %v401, %v400
          %v420 = vunpack.c.l.b16 %v370
          %v421 = vunpack.c.h.b16 %v370
          %v422 = vunpack.c.l.b16 %v371
          %v423 = vunpack.c.h.b16 %v371
          %v424 = vunpack.c.l.b16 %v372
          %v425 = vunpack.c.h.b16 %v372
          %v426 = vunpack.c.l.b16 %v373
          %v427 = vunpack.c.h.b16 %v373
          %v428 = vunpack.c.l.b16 %v374
          %v429 = vunpack.c.h.b16 %v374
          %v430 = vunpack.c.l.b16 %v375
          %v431 = vunpack.c.h.b16 %v375
          %v432 = vunpack.c.l.b16 %v376
          %v433 = vunpack.c.h.b16 %v376
          %v434 = vunpack.c.l.b16 %v377
          %v435 = vunpack.c.h.b16 %v377
          %v436 = vunpack.c.l.b16 %v378
          %v437 = vunpack.c.h.b16 %v378
          %v438 = vunpack.c.l.b16 %v379
          %v439 = vunpack.c.h.b16 %v379
          %v440 = vunpack.c.l.b16 %v380
          %v441 = vunpack.c.h.b16 %v380
          %v442 = vunpack.c.l.b16 %v381
          %v443 = vunpack.c.h.b16 %v381
          %v444 = vunpack.c.l.b16 %v382
          %v445 = vunpack.c.h.b16 %v382
          %v446 = vunpack.c.l.b16 %v383
          %v447 = vunpack.c.h.b16 %v383
          %v448 = vunpack.c.l.b16 %v384
          %v449 = vunpack.c.h.b16 %v384
          %v450 = vunpack.c.l.b16 %v385
          %v451 = vunpack.c.h.b16 %v385
          %v452 = vpack.c.b16 %v422, %v420
          %v453 = vpack.c.b16 %v423, %v421
          %v454 = vpack.c.b16 %v426, %v424
          %v455 = vpack.c.b16 %v427, %v425
          %v456 = vpack.c.b16 %v430, %v428
          %v457 = vpack.c.b16 %v431, %v429
          %v458 = vpack.c.b16 %v434, %v432
          %v459 = vpack.c.b16 %v435, %v433
          %v460 = vpack.c.b16 %v438, %v436
          %v461 = vpack.c.b16 %v439, %v437
          %v462 = vpack.c.b16 %v442, %v440
          %v463 = vpack.c.b16 %v443, %v441
          %v464 = vpack.c.b16 %v446, %v444
          %v465 = vpack.c.b16 %v447, %v445
          %v466 = vpack.c.b16 %v450, %v448
          %v467 = vpack.c.b16 %v451, %v449
          %484 = vmatprep.subr.bf16.mxu0 %v467
          %485 = vmatpush1.bf16.msra.mxu0 %v466
          %486 = vmatprep.subr.bf16.mxu0 %v465
          %487 = vmatpush1.bf16.msra.mxu0 %v464
          %488 = vmatprep.subr.bf16.mxu0 %v463
          %489 = vmatpush1.bf16.msra.mxu0 %v462
          %490 = vmatprep.subr.bf16.mxu0 %v461
          %491 = vmatpush1.bf16.msra.mxu0 %v460
          %492 = vmatprep.subr.bf16.mxu0 %v459
          %493 = vmatpush1.bf16.msra.mxu0 %v458
          %494 = vmatprep.subr.bf16.mxu0 %v457
          %495 = vmatpush1.bf16.msra.mxu0 %v456
          %496 = vmatprep.subr.bf16.mxu0 %v455
          %497 = vmatpush1.bf16.msra.mxu0 %v454
          %498 = vmatprep.subr.bf16.mxu0 %v453
          %499 = vmatpush1.bf16.msra.mxu0 %v452
          %500 = vmatprep.subr.bf16.mxu0 0
          %501 = vmatpush2.bf16.msra.mxu0 0
          %502 = vmatprep.subr.bf16.mxu0 0
          %503 = vmatpush2.bf16.msra.mxu0 0
          %504 = vmatprep.subr.bf16.mxu0 0
          %505 = vmatpush2.bf16.msra.mxu0 0
          %506 = vmatprep.subr.bf16.mxu0 0
          %507 = vmatpush2.bf16.msra.mxu0 0
          %508 = vmatprep.subr.bf16.mxu0 0
          %509 = vmatpush2.bf16.msra.mxu0 0
          %510 = vmatprep.subr.bf16.mxu0 0
          %511 = vmatpush2.bf16.msra.mxu0 0
          %512 = vmatprep.subr.bf16.mxu0 0
          %513 = vmatpush2.bf16.msra.mxu0 0
          %514 = vmatprep.subr.bf16.mxu0 0
          %515 = vmatpush2.bf16.msra.mxu0 0
          %516 = vmatprep.mubr.bf16.mxu0 0
          %517 = vmatmul.mubr.bf16.gmra.mxu0 %v402
          %v518 = vpop.f32.mrf.mxu0
          %v519 = vadd.f32 %v391, %v518
          %v520 = vpop.f32.mrf.mxu0
          %v521 = vadd.f32 %v395, %v520
          %v522 = vpop.f32.mrf.mxu0
          %v523 = vadd.f32 %v391, %v522
          %v524 = vpop.f32.mrf.mxu0
          %v525 = vadd.f32 %v395, %v524
          %526 = vdwg.mxu0
          %v527 = vmul.f32 %v519, %v519
          %v528 = vmul.f32 %v521, %v521
          %v529 = vmul.f32 %v523, %v523
          %v530 = vmul.f32 %v525, %v525
          %v531 = vadd.f32 %v527, %v528
          %532 = vadd.xlane.f32.xlu0 %v531
          %v533 = vpop.xlane.xlu0 %532
          %v534 = vadd.f32 %v529, %v530
          %535 = vadd.xlane.f32.xlu0 %v534
          %v536 = vpop.xlane.xlu0 %535
          %v537 = vmax.f32 %v533, 1e-24
          %v538 = vmax.f32 %v536, 1e-24
          %v539 = vrsqrt.pop %v537
          %v540 = vrsqrt.pop %v538
          %v541 = vmul.f32 %v519, %v539
          %v542 = vmul.f32 %v521, %v539
          %v543 = vmul.f32 %v523, %v540
          %v544 = vmul.f32 %v525, %v540
          %545 = vst [vmem:[%s349] sm:$0xff] %v541
          %546 = vst [vmem:[%s349 + $0x8] sm:$0xff] %v542
          %547 = vst [vmem:[%s349 + $0x10] sm:$0xff] %v543
          %548 = vst [vmem:[%s349 + $0x18] sm:$0xff] %v544
          %v549 = vmax.f32 %v519, 0.0
          %v550 = vmax.f32 %v521, 0.0
          %v551 = vmax.f32 %v523, 0.0
          %v552 = vmax.f32 %v525, 0.0
          %v553 = vpack.c.bf16 %v551, %v549
          %v554 = vpack.c.bf16 %v552, %v550
          %v557 = vunpack.c.l.b16 %v553
          %v558 = vunpack.c.l.b16 %v554
          %v559 = vunpack.c.h.b16 %v553
          %v560 = vunpack.c.h.b16 %v554
          %v561 = vpack.c.b16 %v558, %v557
          %v562 = vpack.c.b16 %v560, %v559
          %565 = vst [vmem:[#allocation2] sm:$0xff] %v561
          %566 = vst [vmem:[#allocation2 + $0x8] sm:$0xff] %v562
        $region56: #{tpu_custom_call.1} parent=39 // pred_fallthru
          _
        %v567 = vld [vmem:[#allocation2] sm:$0xff]
        %v568 = vld [vmem:[#allocation2 + $0x8] sm:$0xff]
        %v569 = vld [vmem:[%s315] sm:$0xf]
        %v570 = vld [vmem:[%s315 + $0x4] sm:$0xf]
        %v571 = vld [vmem:[%s315 + $0x8] sm:$0xf]
        %v572 = vld [vmem:[%s315 + $0xc] sm:$0xf]
        %v573 = vld [vmem:[%s315 + $0x10] sm:$0xf]
        %v574 = vld [vmem:[%s315 + $0x14] sm:$0xf]
        %v575 = vld [vmem:[%s315 + $0x18] sm:$0xf]
        %v576 = vld [vmem:[%s315 + $0x1c] sm:$0xf]
        %v577 = vld [vmem:[%s315 + $0x20] sm:$0xf]
        %v578 = vld [vmem:[%s315 + $0x24] sm:$0xf]
        %v579 = vld [vmem:[%s315 + $0x28] sm:$0xf]
        %v580 = vld [vmem:[%s315 + $0x2c] sm:$0xf]
        %v581 = vld [vmem:[%s315 + $0x30] sm:$0xf]
        %v582 = vld [vmem:[%s315 + $0x34] sm:$0xf]
        %v583 = vld [vmem:[%s315 + $0x38] sm:$0xf]
        %v584 = vld [vmem:[%s315 + $0x3c] sm:$0xf]
        %v585 = vld [vmem:[%s315 + $0x40] sm:$0xf]
        %v586 = vld [vmem:[%s315 + $0x44] sm:$0xf]
        %v587 = vld [vmem:[%s315 + $0x48] sm:$0xf]
        %v588 = vld [vmem:[%s315 + $0x4c] sm:$0xf]
        %v589 = vld [vmem:[%s315 + $0x50] sm:$0xf]
        %v590 = vld [vmem:[%s315 + $0x54] sm:$0xf]
        %v591 = vld [vmem:[%s315 + $0x58] sm:$0xf]
        %v592 = vld [vmem:[%s315 + $0x5c] sm:$0xf]
        %v593 = vld [vmem:[%s315 + $0x60] sm:$0xf]
        %v594 = vld [vmem:[%s315 + $0x64] sm:$0xf]
        %v595 = vld [vmem:[%s315 + $0x68] sm:$0xf]
        %v596 = vld [vmem:[%s315 + $0x6c] sm:$0xf]
        %v597 = vld [vmem:[%s315 + $0x70] sm:$0xf]
        %v598 = vld [vmem:[%s315 + $0x74] sm:$0xf]
        %v599 = vld [vmem:[%s315 + $0x78] sm:$0xf]
        %v600 = vld [vmem:[%s315 + $0x7c] sm:$0xf]
        %v601 = vld [vmem:[%s360] sm:$0x1]
        %v603 = vlaneseq
        %v604 = vshrl.u32 %v603, 7
        %v605 = vsub.s32 0, %v604
        %v606 = vrot.slane %v601, %v605
        %v610 = vunpack.c.l.b16 %v567
        %v611 = vunpack.c.h.b16 %v567
        %v612 = vunpack.c.l.b16 %v568
        %v613 = vunpack.c.h.b16 %v568
        %v614 = vpack.c.b16 %v612, %v610
        %v615 = vpack.c.b16 %v613, %v611
        %v650 = vunpack.c.l.b16 %v569
        %v651 = vunpack.c.l.b16 %v570
        %v652 = vunpack.c.l.b16 %v571
        %v653 = vunpack.c.l.b16 %v572
        %v654 = vunpack.c.l.b16 %v573
        %v655 = vunpack.c.l.b16 %v574
        %v656 = vunpack.c.l.b16 %v575
        %v657 = vunpack.c.l.b16 %v576
        %v658 = vunpack.c.l.b16 %v577
        %v659 = vunpack.c.l.b16 %v578
        %v660 = vunpack.c.l.b16 %v579
        %v661 = vunpack.c.l.b16 %v580
        %v662 = vunpack.c.l.b16 %v581
        %v663 = vunpack.c.l.b16 %v582
        %v664 = vunpack.c.l.b16 %v583
        %v665 = vunpack.c.l.b16 %v584
        %v666 = vunpack.c.l.b16 %v585
        %v667 = vunpack.c.l.b16 %v586
        %v668 = vunpack.c.l.b16 %v587
        %v669 = vunpack.c.l.b16 %v588
        %v670 = vunpack.c.l.b16 %v589
        %v671 = vunpack.c.l.b16 %v590
        %v672 = vunpack.c.l.b16 %v591
        %v673 = vunpack.c.l.b16 %v592
        %v674 = vunpack.c.l.b16 %v593
        %v675 = vunpack.c.l.b16 %v594
        %v676 = vunpack.c.l.b16 %v595
        %v677 = vunpack.c.l.b16 %v596
        %v678 = vunpack.c.l.b16 %v597
        %v679 = vunpack.c.l.b16 %v598
        %v680 = vunpack.c.l.b16 %v599
        %v681 = vunpack.c.l.b16 %v600
        %v682 = vpack.c.b16 %v651, %v650
        %v683 = vpack.c.b16 %v653, %v652
        %v684 = vpack.c.b16 %v655, %v654
        %v685 = vpack.c.b16 %v657, %v656
        %v686 = vpack.c.b16 %v659, %v658
        %v687 = vpack.c.b16 %v661, %v660
        %v688 = vpack.c.b16 %v663, %v662
        %v689 = vpack.c.b16 %v665, %v664
        %v690 = vpack.c.b16 %v667, %v666
        %v691 = vpack.c.b16 %v669, %v668
        %v692 = vpack.c.b16 %v671, %v670
        %v693 = vpack.c.b16 %v673, %v672
        %v694 = vpack.c.b16 %v675, %v674
        %v695 = vpack.c.b16 %v677, %v676
        %v696 = vpack.c.b16 %v679, %v678
        %v697 = vpack.c.b16 %v681, %v680
        %714 = vmatprep.subr.bf16.mxu0 0
        %715 = vmatpush1.bf16.msra.mxu0 %v689
        %716 = vmatprep.subr.bf16.mxu0 0
        %717 = vmatpush1.bf16.msra.mxu0 %v688
        %718 = vmatprep.subr.bf16.mxu0 0
        %719 = vmatpush1.bf16.msra.mxu0 %v687
        %720 = vmatprep.subr.bf16.mxu0 0
        %721 = vmatpush1.bf16.msra.mxu0 %v686
        %722 = vmatprep.subr.bf16.mxu0 0
        %723 = vmatpush1.bf16.msra.mxu0 %v685
        %724 = vmatprep.subr.bf16.mxu0 0
        %725 = vmatpush1.bf16.msra.mxu0 %v684
        %726 = vmatprep.subr.bf16.mxu0 0
        %727 = vmatpush1.bf16.msra.mxu0 %v683
        %728 = vmatprep.subr.bf16.mxu0 0
        %729 = vmatpush1.bf16.msra.mxu0 %v682
        %730 = vmatprep.subr.bf16.mxu0 0
        %731 = vmatpush2.bf16.msra.mxu0 %v697
        %732 = vmatprep.subr.bf16.mxu0 0
        %733 = vmatpush2.bf16.msra.mxu0 %v696
        %734 = vmatprep.subr.bf16.mxu0 0
        %735 = vmatpush2.bf16.msra.mxu0 %v695
        %736 = vmatprep.subr.bf16.mxu0 0
        %737 = vmatpush2.bf16.msra.mxu0 %v694
        %738 = vmatprep.subr.bf16.mxu0 0
        %739 = vmatpush2.bf16.msra.mxu0 %v693
        %740 = vmatprep.subr.bf16.mxu0 0
        %741 = vmatpush2.bf16.msra.mxu0 %v692
        %742 = vmatprep.subr.bf16.mxu0 0
        %743 = vmatpush2.bf16.msra.mxu0 %v691
        %744 = vmatprep.subr.bf16.mxu0 0
        %745 = vmatpush2.bf16.msra.mxu0 %v690
        %746 = vmatprep.mubr.bf16.mxu0 %v615
        %747 = vmatmul.mubr.bf16.gmra.mxu0 %v614
        %v748 = vpop.f32.mrf.mxu0
        %v749 = vadd.f32 %v606, %v748
        %v750 = vpop.f32.mrf.mxu0
        %v751 = vpop.f32.mrf.mxu0
        %v752 = vadd.f32 %v606, %v751
        %v753 = vpop.f32.mrf.mxu0
        %754 = vdwg.mxu0
        %755 = vst [vmem:[%s356] sm:$0xff] %v749
        %756 = vst [vmem:[%s356 + $0x8] sm:$0xff] %v752
        %s757 = sand.u32 %s168, 1
        %s758 = scalar_lea.sflag [#allocation5], %s757
        %s759 = sand.u32 %s168, 1
        %s760 = smul.addr %s759, 32
        %s761 = scalar_lea.vmem [#allocation9], %s760
        %s762 = sand.u32 %s196, 1
        %s763 = scalar_lea.sflag [#allocation11], %s762
        %s764 = sand.u32 %s196, 1
        %s765 = smul.addr %s764, 16
        %s766 = scalar_lea.vmem [#allocation10], %s765
        // Predicated region
        $region57: #{tpu_custom_call.1} parent=39 // pred_check
          %p767 = pneg %p178
        $region58: #{tpu_custom_call.1} parent=39 // pred_check_branch
          %769 = sbr.rel (%p767) target = $region60
        $region59: #{tpu_custom_call.1} parent=39 // pred_region
          %s770 = smul.u32 2, %s32
          %s772 = ssub.s32 512, 512
          %773 = vsyncadd %s758, %s772
          %s774 = smul.addr %s770, 2
          %s775 = smul.addr %s774, 128
          %s776 = scalar_lea.hbm %s5, %s775
          %s777 = sshll.u32 %s761, 4
          %s778 = int_to_ptr.vmem [resolvable:$true] %s777
          %783 = dma.vmem_to_hbm [thread:$0]  %s778, 512, %s776, %s758, 256, 256, 16
        $region60: #{tpu_custom_call.1} parent=39 // pred_fallthru
          _
        // Predicated region
        $region61: #{tpu_custom_call.1} parent=39 // pred_check
          %p784 = pneg %p206
        $region62: #{tpu_custom_call.1} parent=39 // pred_check_branch
          %786 = sbr.rel (%p784) target = $region64
        $region63: #{tpu_custom_call.1} parent=39 // pred_region
          %s787 = smul.u32 2, %s32
          %s789 = ssub.s32 256, 256
          %790 = vsyncadd %s763, %s789
          %s791 = smul.addr %s787, 2
          %s792 = sadd.s32 %s33, %s791
          %s793 = smul.addr %s792, 128
          %s794 = scalar_lea.hbm %s6, %s793
          %s795 = sshll.u32 %s766, 4
          %s796 = int_to_ptr.vmem [resolvable:$true] %s795
          %801 = dma.vmem_to_hbm [thread:$0]  %s796, 256, %s794, %s763, 128, 256, 8
        $region64: #{tpu_custom_call.1} parent=39 // pred_fallthru
          _
      $region40: #{tpu_custom_call.1} parent=5 // pred_fallthru
        _
      %p802 = scmp.le.s32.totalorder 2, %s23
      // Predicated region
      $region65: #{tpu_custom_call.1} parent=5 // pred_check
        %p803 = pneg %p802
      $region66: #{tpu_custom_call.1} parent=5 // pred_check_branch
        %805 = sbr.rel (%p803) target = $region68
      $region67: #{tpu_custom_call.1} parent=5 // pred_region
        %s806 = ssub.s32 %s23, 2
        // Predicated region
        $region69: #{tpu_custom_call.1} parent=67 // pred_check
          %p807 = pneg %p184
        $region70: #{tpu_custom_call.1} parent=67 // pred_check_branch
          %809 = sbr.rel (%p807) target = $region72
        $region71: #{tpu_custom_call.1} parent=67 // pred_region
          %s810 = sand.u32 %s169, 1
          %s811 = scalar_lea.sflag [#allocation5], %s810
          %s812 = sand.u32 %s169, 1
          %s813 = smul.addr %s812, 32
          %s814 = scalar_lea.vmem [#allocation9], %s813
          %815 = dma.done %s811, 512
        $region72: #{tpu_custom_call.1} parent=67 // pred_fallthru
          _
        // Predicated region
        $region73: #{tpu_custom_call.1} parent=67 // pred_check
          %p816 = pneg %p212
        $region74: #{tpu_custom_call.1} parent=67 // pred_check_branch
          %818 = sbr.rel (%p816) target = $region76
        $region75: #{tpu_custom_call.1} parent=67 // pred_region
          %s819 = sand.u32 %s197, 1
          %s820 = scalar_lea.sflag [#allocation11], %s819
          %s821 = sand.u32 %s197, 1
          %s822 = smul.addr %s821, 16
          %s823 = scalar_lea.vmem [#allocation10], %s822
          %824 = dma.done %s820, 256
        $region76: #{tpu_custom_call.1} parent=67 // pred_fallthru
          _
      $region68: #{tpu_custom_call.1} parent=5 // pred_fallthru
        _
    $region6: #{tpu_custom_call.1} parent=1 // loop_footer
      %s27 = sadd.s32 1, %s23
    $region7: #{tpu_custom_call.1} parent=1 // loop_footer_branch
      %22 = sbr.rel target = $region3
    $region8: #{tpu_custom_call.1} parent=1 // loop_exit
      _
    %825 = vsyncpa [#allocation4], 1
    %s826 = scalar_lea.sflag [#allocation4], 1
    %827 = vsyncpa %s826, 1
    %828 = vsyncpa [#allocation7], 1
    %829 = vsyncpa [#allocation5], 1
    %s830 = scalar_lea.sflag [#allocation5], 1
    %831 = vsyncpa %s830, 1
    %832 = vsyncpa [#allocation11], 1
    %s833 = scalar_lea.sflag [#allocation11], 1
    %834 = vsyncpa %s833, 1

</llo_original>
